<compile_context>
chip_gen: v6e
topology: v6e:2x2x1
jax: 0.10.0
libtpu: 0.0.40
codegen_flags: <defaults>
</compile_context>

<pallas_src>
import functools

import jax
import jax.numpy as jnp
from jax import lax
from jax.experimental import pallas as pl
from jax.experimental.pallas import tpu as pltpu

_LANE = 128
_SUBLANE = 8


def _ce_ls_kernel(x_ref, t_ref, delta_ref, out_ref, *,
                  num_classes, tile_b, true_b):
    """One batch tile: logits (C, TILE_B), targets (1, TILE_B) -> per-sample loss (1, TILE_B).

    Classes live on the sublane axis, batch on the 128-lane axis.
    """
    x = x_ref[...].astype(jnp.float32)            # (C, TB) logits (upcast in-kernel)
    t = t_ref[...]                                # (1, TB) int32 labels
    delta = delta_ref[0, 0]                       # scalar smoothing factor (SMEM)
    C = num_classes

    # --- numerically stable log-softmax pieces along the class (sublane) axis ---
    m = jnp.max(x, axis=0, keepdims=True)                       # (1, TB)
    z = x - m                                                   # (C, TB)
    lse = jnp.log(jnp.sum(jnp.exp(z), axis=0, keepdims=True))   # (1, TB)
    # nll = lse - z  (== -log_softmax); never materialize nll*y_sm.

    # sum_c nll = C*lse - sum_c z
    sum_z = jnp.sum(z, axis=0, keepdims=True)                   # (1, TB)
    sum_nll = jnp.float32(C) * lse - sum_z                      # (1, TB)

    # sum_c (one_hot * nll): iota-compare select, no gather.
    cls_ids = lax.broadcasted_iota(jnp.int32, x.shape, 0)       # (C, TB)
    nll_tgt = jnp.sum(jnp.where(cls_ids == t, lse - z, jnp.float32(0.0)),
                      axis=0, keepdims=True)                    # (1, TB)

    off = delta / jnp.float32(C - 1)
    per_sample = (jnp.float32(1.0) - delta - off) * nll_tgt + off * sum_nll

    # Mask out padded batch columns (only generated when B % TILE_B != 0).
    if true_b is not None:
        col = (pl.program_id(0) * tile_b
               + lax.broadcasted_iota(jnp.int32, (1, tile_b), 1))
        per_sample = jnp.where(col < true_b, per_sample, jnp.float32(0.0))

    out_ref[...] = per_sample


def _round_up(x, m):
    return -(-x // m) * m


def cross_entropy_with_label_smoothing(inputs, targets, delta=0.0, *,
                                       reduce=True, num_classes=10,
                                       tile_b=None):
    """JAX wrapper mirroring CrossEntropyWithLabelSmoothing.forward."""
    assert inputs.ndim == 2 and inputs.shape[1] == num_classes
    assert num_classes > 1, "delta/(C-1) is undefined for num_classes == 1"
    B, C = inputs.shape

    if reduce in [True, "mean"]:
        reduce_mean = True
    elif reduce in [False, "sum"]:
        reduce_mean = False
    else:
        raise ValueError("reduce must be one of True/'mean'/False/'sum'")

    # --- batch tile sizing (lane-dense, VMEM-budget aware, conservative on v7x/v5e) ---
    if tile_b is None:
        bytes_per_col = _round_up(C, _SUBLANE) * 4            # f32 VMEM footprint per sample
        budget = 8 * 1024 * 1024                              # ~8 MiB for double-buffered logits
        max_tile = max(_LANE, (budget // (2 * bytes_per_col) // _LANE) * _LANE)
        tile_b = max(_LANE, min(1024, max_tile, _round_up(B, _LANE)))
    else:
        tile_b = max(_LANE, _round_up(tile_b, _LANE))

    b_pad = _round_up(B, tile_b)
    num_tiles = b_pad // tile_b

    # --- wrapper-side layout plumbing: batch on the 128-lane axis ---
    xt = jnp.pad(inputs, ((0, b_pad - B), (0, 0))).T          # (C, B_pad), original dtype
    t2d = jnp.pad(targets.astype(jnp.int32), (0, b_pad - B)).reshape(1, b_pad)
    delta_arr = jnp.full((1, 1), delta, dtype=jnp.float32)

    kernel = functools.partial(
        _ce_ls_kernel,
        num_classes=C,
        tile_b=tile_b,
        true_b=(B if b_pad != B else None),
    )

    per_sample = pl.pallas_call(
        kernel,
        out_shape=jax.ShapeDtypeStruct((1, b_pad), jnp.float32),
        grid=(num_tiles,),
        in_specs=[
            pl.BlockSpec((C, tile_b), lambda i: (0, i)),       # logits tile (C, TILE_B)
            pl.BlockSpec((1, tile_b), lambda i: (0, i)),       # targets tile (1, TILE_B)
            pl.BlockSpec(memory_space=pltpu.SMEM),             # delta scalar (1, 1)
        ],
        out_specs=pl.BlockSpec((1, tile_b), lambda i: (0, i)), # lane-dense per-sample losses
        compiler_params=pltpu.CompilerParams(
            dimension_semantics=("parallel",),                 # shards across TCs on v7x
            vmem_limit_bytes=32 * 1024 * 1024,                 # safe on v5e/v6e/v7x
        ),
    )(xt, t2d, delta_arr)

    total = jnp.sum(per_sample)                                # padded cols are zeroed in-kernel
    if reduce_mean:
        return total / jnp.float32(B)                          # divide by TRUE batch size
    return total


def _reference(inputs, targets, delta, reduce_mean, num_classes):
    """Pure-JAX reference for verification."""
    y_gt = jax.nn.one_hot(targets, num_classes, dtype=jnp.float32)
    off = delta / (num_classes - 1)
    y_sm = (1.0 - delta - off) * y_gt + off
    nll = -jax.nn.log_softmax(inputs.astype(jnp.float32), axis=1)
    per_sample = jnp.sum(nll * y_sm, axis=1)
    return jnp.mean(per_sample) if reduce_mean else jnp.sum(per_sample)


if __name__ == "__main__":
    key = jax.random.PRNGKey(0)
    k_x, k_t, k_x2, k_t2 = jax.random.split(key, 4)

    # Case 1: small batch (remainder masking inside a single 128-wide tile).
    B, C = 8, 10
    logits = jax.random.normal(k_x, (B, C), dtype=jnp.float32)
    targets = jax.random.randint(k_t, (B,), 0, C, dtype=jnp.int32)
    delta = 0.1

    loss_mean = cross_entropy_with_label_smoothing(
        logits, targets, delta, reduce=True, num_classes=C)
    loss_sum = cross_entropy_with_label_smoothing(
        logits, targets, delta, reduce=False, num_classes=C)
    jax.block_until_ready((loss_mean, loss_sum))

    ref_mean = _reference(logits, targets, delta, True, C)
    ref_sum = _reference(logits, targets, delta, False, C)
    assert jnp.allclose(loss_mean, ref_mean, rtol=1e-5, atol=1e-5), (loss_mean, ref_mean)
    assert jnp.allclose(loss_sum, ref_sum, rtol=1e-5, atol=1e-5), (loss_sum, ref_sum)

    # Case 2: multi-tile grid with a remainder tile (forced tile_b=128, B=300 -> 3 tiles).
    B2 = 300
    logits2 = jax.random.normal(k_x2, (B2, C), dtype=jnp.float32)
    targets2 = jax.random.randint(k_t2, (B2,), 0, C, dtype=jnp.int32)

    loss2_mean = cross_entropy_with_label_smoothing(
        logits2, targets2, delta, reduce=True, num_classes=C, tile_b=128)
    loss2_sum = cross_entropy_with_label_smoothing(
        logits2, targets2, delta, reduce=False, num_classes=C, tile_b=128)
    jax.block_until_ready((loss2_mean, loss2_sum))

    ref2_mean = _reference(logits2, targets2, delta, True, C)
    ref2_sum = _reference(logits2, targets2, delta, False, C)
    assert jnp.allclose(loss2_mean, ref2_mean, rtol=1e-5, atol=1e-5), (loss2_mean, ref2_mean)
    assert jnp.allclose(loss2_sum, ref2_sum, rtol=1e-4, atol=1e-4), (loss2_sum, ref2_sum)

    print("KERNEL_OK")
</pallas_src>

<mosaic_0001>
module attributes {stable_mosaic.version = 11 : i64} {
  func.func @_ce_ls_kernel(%arg0: i32, %arg1: memref<10x128xf32, #tpu.memory_space<vmem>>, %arg2: memref<1x128xi32, #tpu.memory_space<vmem>>, %arg3: memref<1x1xf32, #tpu.memory_space<smem>>, %arg4: memref<1x128xf32, #tpu.memory_space<vmem>>) attributes {dimension_semantics = [#tpu.dimension_semantics<parallel>], iteration_bounds = array<i64: 1>, scalar_prefetch = 0 : i64, scratch_operands = 0 : i64, tpu.core_type = #tpu.core_type<tc>, window_params = [{transform_indices = @transform_0, window_bounds = array<i64: 10, 128>}, {transform_indices = @transform_1, window_bounds = array<i64: 1, 128>}, {transform_indices = @transform_2, window_bounds = array<i64: 1, 1>}, {transform_indices = @transform_3, window_bounds = array<i64: 1, 128>}]} {
    %c0 = arith.constant 0 : index
    %c0_0 = arith.constant 0 : index
    %0 = vector.load %arg1[%c0, %c0_0] : memref<10x128xf32, #tpu.memory_space<vmem>>, vector<10x128xf32>
    %c0_1 = arith.constant 0 : index
    %c0_2 = arith.constant 0 : index
    %1 = vector.load %arg2[%c0_1, %c0_2] : memref<1x128xi32, #tpu.memory_space<vmem>>, vector<1x128xi32>
    %c0_3 = arith.constant 0 : index
    %c0_4 = arith.constant 0 : index
    %2 = memref.load %arg3[%c0_3, %c0_4] : memref<1x1xf32, #tpu.memory_space<smem>>
    %cst = arith.constant dense<0xFF800000> : vector<128xf32>
    %3 = vector.multi_reduction <maximumf>, %0, %cst [0] : vector<10x128xf32> to vector<128xf32>
    %4 = vector.shape_cast %3 : vector<128xf32> to vector<1x128xf32>
    %5 = vector.broadcast %4 : vector<1x128xf32> to vector<10x128xf32>
    %6 = arith.subf %0, %5 : vector<10x128xf32>
    %7 = math.exp %6 : vector<10x128xf32>
    %cst_5 = arith.constant dense<0.000000e+00> : vector<128xf32>
    %8 = vector.multi_reduction <add>, %7, %cst_5 [0] : vector<10x128xf32> to vector<128xf32>
    %9 = vector.shape_cast %8 : vector<128xf32> to vector<1x128xf32>
    %10 = math.log %9 : vector<1x128xf32>
    %cst_6 = arith.constant dense<0.000000e+00> : vector<128xf32>
    %11 = vector.multi_reduction <add>, %6, %cst_6 [0] : vector<10x128xf32> to vector<128xf32>
    %12 = vector.shape_cast %11 : vector<128xf32> to vector<1x128xf32>
    %cst_7 = arith.constant 1.000000e+01 : f32
    %13 = vector.broadcast %cst_7 : f32 to vector<1x128xf32>
    %14 = arith.mulf %13, %10 : vector<1x128xf32>
    %15 = arith.subf %14, %12 : vector<1x128xf32>
    %16 = tpu.iota {dimensions = array<i32: 0>} : vector<10x128xi32>
    %17 = vector.broadcast %1 : vector<1x128xi32> to vector<10x128xi32>
    %18 = arith.cmpi eq, %16, %17 : vector<10x128xi32>
    %19 = vector.broadcast %10 : vector<1x128xf32> to vector<10x128xf32>
    %20 = arith.subf %19, %6 : vector<10x128xf32>
    %cst_8 = arith.constant 0.000000e+00 : f32
    %21 = vector.broadcast %cst_8 : f32 to vector<10x128xf32>
    %22 = arith.select %18, %20, %21 : vector<10x128xi1>, vector<10x128xf32>
    %cst_9 = arith.constant dense<0.000000e+00> : vector<128xf32>
    %23 = vector.multi_reduction <add>, %22, %cst_9 [0] : vector<10x128xf32> to vector<128xf32>
    %24 = vector.shape_cast %23 : vector<128xf32> to vector<1x128xf32>
    %cst_10 = arith.constant 9.000000e+00 : f32
    %25 = arith.divf %2, %cst_10 : f32
    %cst_11 = arith.constant 1.000000e+00 : f32
    %26 = arith.subf %cst_11, %2 : f32
    %27 = arith.subf %26, %25 : f32
    %28 = vector.broadcast %27 : f32 to vector<1x128xf32>
    %29 = arith.mulf %28, %24 : vector<1x128xf32>
    %30 = vector.broadcast %25 : f32 to vector<1x128xf32>
    %31 = arith.mulf %30, %15 : vector<1x128xf32>
    %32 = arith.addf %29, %31 : vector<1x128xf32>
    %c128_i32 = arith.constant 128 : i32
    %33 = arith.muli %arg0, %c128_i32 : i32
    %34 = tpu.iota {dimensions = array<i32: 1>} : vector<1x128xi32>
    %35 = vector.broadcast %33 : i32 to vector<1x128xi32>
    %36 = arith.addi %35, %34 : vector<1x128xi32>
    %c8_i32 = arith.constant 8 : i32
    %37 = vector.broadcast %c8_i32 : i32 to vector<1x128xi32>
    %38 = arith.cmpi slt, %36, %37 : vector<1x128xi32>
    %cst_12 = arith.constant 0.000000e+00 : f32
    %39 = vector.broadcast %cst_12 : f32 to vector<1x128xf32>
    %40 = arith.select %38, %32, %39 : vector<1x128xi1>, vector<1x128xf32>
    %c0_13 = arith.constant 0 : index
    %c0_14 = arith.constant 0 : index
    %41 = vector.load %arg4[%c0_13, %c0_14] : memref<1x128xf32, #tpu.memory_space<vmem>>, vector<1x128xf32>
    tpu.vector_store %arg4[%c0_13, %c0_14], %40 {strides = array<i32>} : memref<1x128xf32, #tpu.memory_space<vmem>>, vector<1x128xf32>,
    return
  }
  func.func @transform_0(%arg0: i32) -> (i32, i32) {
    %c0_i32 = arith.constant 0 : i32
    %c0_i32_0 = arith.constant 0 : i32
    return %c0_i32, %arg0 : i32, i32
  }
  func.func @transform_1(%arg0: i32) -> (i32, i32) {
    %c0_i32 = arith.constant 0 : i32
    %c0_i32_0 = arith.constant 0 : i32
    return %c0_i32, %arg0 : i32, i32
  }
  func.func @transform_2(%arg0: i32) -> (i32, i32) {
    %c0_i32 = arith.constant 0 : i32
    %c0_i32_0 = arith.constant 0 : i32
    %c0_i32_1 = arith.constant 0 : i32
    return %c0_i32, %c0_i32_0 : i32, i32
  }
  func.func @transform_3(%arg0: i32) -> (i32, i32) {
    %c0_i32 = arith.constant 0 : i32
    %c0_i32_0 = arith.constant 0 : i32
    return %c0_i32, %arg0 : i32, i32
  }
}

</mosaic_0001>

<llo_original>
// kernel: tpu_custom_call.1
$region0: #{tpu_custom_call.1}
  #allocation0 [shape = 'u32[]', space=smem, size = 0x4, offset = 0x4, fixed_abs, tag = 'smem constant byte address 0x4 - core index']
  #allocation1 [shape = 'u32[144,128]{1,0:T(1,128)}', space=vmem, size = 0x12000, scoped, tag = 'internal scratch']
  #allocation2 [shape = 'f32[1,1]{1,0:T(1,128)S(6)}', space=smem, size = 0x200, scoped, tag = 'scoped memory for tpu_custom_call.1']
  %s0 = inlined_call_operand.hbm [shape: f32[10,128], index: 0, kind: input, shape index: {}]
  %s1 = inlined_call_operand.vmem [shape: s32[1,128], index: 1, kind: input, shape index: {}]
  %s2 = inlined_call_operand.<no memory space> [shape: f32[1,1], index: 2, kind: input, shape index: {}]
  %s3 = inlined_call_operand.hbm [shape: f32[1,128], index: 3, kind: output, shape index: {}]
  %s4 = sld [smem:[#allocation0]]
  $region26: #{tpu_custom_call.1} parent=0
    _
  %s6 = ssub.s32 1, %s4
  %s7 = scalar_select 0, %s6, %s4
  %8 = sst [smem:[#allocation2]] %s2
  $region1: #{tpu_custom_call.1} parent=0
    #allocation3 [shape = 'u8[8192]{0}', space=vmem, size = 0x2000, scoped, tag = 'input window, operand 0, single buffered']
    #allocation4 [shape = 's32[1]{0}', space=sflag, size = 0x4, scoped, tag = 'scoped memory for tpu_custom_call.1']
    #allocation5 [shape = 's32[1]{0}', space=sflag, size = 0x4, scoped, tag = 'scoped memory for tpu_custom_call.1']
    #allocation6 [shape = 'u8[512]{0}', space=vmem, size = 0x400, scoped, tag = 'output window, operand 0, single buffered']
    %9 = vsyncpa [#allocation4], 0
    %10 = vsyncpa [#allocation5], 0
    // Predicated region
    $region2: #{tpu_custom_call.1} parent=1 // pred_check
      _
    $region3: #{tpu_custom_call.1} parent=1 // pred_check_branch
      %12 = sbr.rel (0) target = $region5
    $region4: #{tpu_custom_call.1} parent=1 // pred_region
      %s14 = ssub.s32 256, 256
      %15 = vsyncadd [#allocation4], %s14
      %s16 = sshll.u32 [#allocation3], 4
      %s17 = int_to_ptr.vmem [resolvable:$true] %s16
      %22 = dma.hbm_to_vmem [thread:$0]  %s0, 256, %s17, [#allocation4], 128, 128, 8
    $region5: #{tpu_custom_call.1} parent=1 // pred_fallthru
      _
    // Predicated region
    $region6: #{tpu_custom_call.1} parent=1 // pred_check
      _
    $region7: #{tpu_custom_call.1} parent=1 // pred_check_branch
      %24 = sbr.rel (0) target = $region9
    $region8: #{tpu_custom_call.1} parent=1 // pred_region
      _
    $region9: #{tpu_custom_call.1} parent=1 // pred_fallthru
      _
    // Predicated region
    $region10: #{tpu_custom_call.1} parent=1 // pred_check
      _
    $region11: #{tpu_custom_call.1} parent=1 // pred_check_branch
      %26 = sbr.rel (0) target = $region13
    $region12: #{tpu_custom_call.1} parent=1 // pred_region
      _
    $region13: #{tpu_custom_call.1} parent=1 // pred_fallthru
      _
    // Predicated region
    $region14: #{tpu_custom_call.1} parent=1 // pred_check
      _
    $region15: #{tpu_custom_call.1} parent=1 // pred_check_branch
      %28 = sbr.rel (0) target = $region17
    $region16: #{tpu_custom_call.1} parent=1 // pred_region
      %29 = dma.done [#allocation4], 256
    $region17: #{tpu_custom_call.1} parent=1 // pred_fallthru
      _
    %v30 = vld [vmem:[#allocation3] sm:$0xff]
    %v31 = vld [vmem:[#allocation3 + $0x8] sm:$0x3]
    %v32 = vld [vmem:[%s1] sm:$0x1]
    %s33 = sld [smem:[#allocation2]]
    %vm34 = vcmask 1041408
    %v35 = vsel %vm34, %v31, -inf
    %v36 = vmax.f32 %v30, %v35
    %v37 = vrot.slane %v36, 4
    %v38 = vmax.f32 %v36, %v37
    %v39 = vrot.slane %v38, 2
    %v40 = vmax.f32 %v38, %v39
    %v41 = vrot.slane %v40, 1
    %v42 = vmax.f32 %v40, %v41
    %v43 = vsub.f32 %v30, %v42
    %v44 = vsub.f32 %v31, %v42
    %v45 = vmul.f32 %v43, 1.442695
    %v46 = vpow.pop %v45
    %v47 = vmul.f32 %v44, 1.442695
    %v48 = vpow.pop %v47
    %v49 = vsel %vm34, %v48, 0.0
    %v50 = vadd.f32 %v46, %v49
    %v51 = vrot.slane %v50, 4
    %v52 = vadd.f32 %v50, %v51
    %v53 = vrot.slane %v52, 2
    %v54 = vadd.f32 %v52, %v53
    %v55 = vrot.slane %v54, 1
    %v56 = vadd.f32 %v54, %v55
    %v57 = vlog2.pop %v56
    %v58 = vmul.f32 %v57, 0.6931472
    %v59 = vsel %vm34, %v44, 0.0
    %v60 = vadd.f32 %v43, %v59
    %v61 = vrot.slane %v60, 4
    %v62 = vadd.f32 %v60, %v61
    %v63 = vrot.slane %v62, 2
    %v64 = vadd.f32 %v62, %v63
    %v65 = vrot.slane %v64, 1
    %v66 = vadd.f32 %v64, %v65
    %v67 = vmul.f32 %v58, 10.0
    %v68 = vsub.f32 %v67, %v66
    %v69 = vlaneseq
    %v70 = vshrl.u32 %v69, 7
    %v71 = vadd.s32 %v70, 8
    %v72 = vlaneseq
    %v73 = vshrl.u32 %v72, 7
    %v74 = vsub.s32 0, %v73
    %v75 = vrot.slane %v32, %v74
    %vm76 = vcmp.eq.s32.totalorder %v70, %v75
    %vm77 = vcmp.eq.s32.totalorder %v71, %v75
    %v78 = vsub.f32 %v58, %v43
    %v79 = vsub.f32 %v58, %v44
    %v80 = vsel %vm76, %v78, 0.0
    %v81 = vsel %vm77, %v79, 0.0
    %v82 = vsel %vm34, %v81, 0.0
    %v83 = vadd.f32 %v80, %v82
    %v84 = vrot.slane %v83, 4
    %v85 = vadd.f32 %v83, %v84
    %v86 = vrot.slane %v85, 2
    %v87 = vadd.f32 %v85, %v86
    %v88 = vrot.slane %v87, 1
    %v89 = vadd.f32 %v87, %v88
    %v90 = vrcp.pop 9.0
    %s91 = vtos %v90
    %s92 = smul.f32 %s33, %s91
    %s93 = ssub.f32 1.0, %s33
    %s94 = ssub.f32 %s93, %s92
    %v95 = vstv %s94
    %v96 = vmul.f32 %v95, %v89
    %v97 = vstv %s92
    %v98 = vmul.f32 %v97, %v68
    %v99 = vadd.f32 %v96, %v98
    %s100 = smul.u32 0, 128
    %v101 = vlaneseq
    %v102 = vand.u32 %v101, 127
    %v103 = vstv %s100
    %v104 = vadd.s32 %v103, %v102
    %vm105 = vcmp.lt.s32.totalorder %v104, 8
    %v106 = vsel %vm105, %v99, 0.0
    %107 = vst [vmem:[#allocation6] sm:$0x1] %v106
    // Predicated region
    $region18: #{tpu_custom_call.1} parent=1 // pred_check
      _
    $region19: #{tpu_custom_call.1} parent=1 // pred_check_branch
      %109 = sbr.rel (0) target = $region21
    $region20: #{tpu_custom_call.1} parent=1 // pred_region
      %s111 = ssub.s32 16, 16
      %112 = vsyncadd [#allocation5], %s111
      %s114 = sshll.u32 [#allocation6], 4
      %s115 = int_to_ptr.vmem [resolvable:$true] %s114
      %117 = dma.vmem_to_hbm [thread:$0]  %s115, 16, %s3, [#allocation5]
    $region21: #{tpu_custom_call.1} parent=1 // pred_fallthru
      _
    // Predicated region
    $region22: #{tpu_custom_call.1} parent=1 // pred_check
      _
    $region23: #{tpu_custom_call.1} parent=1 // pred_check_branch
      %119 = sbr.rel (0) target = $region25
    $region24: #{tpu_custom_call.1} parent=1 // pred_region
      %120 = dma.done [#allocation5], 16
    $region25: #{tpu_custom_call.1} parent=1 // pred_fallthru
      _
    %121 = vsyncpa [#allocation4], 1
    %122 = vsyncpa [#allocation5], 1

</llo_original>
